<compile_context>
chip_gen: v5e
topology: v5e:2x2
jax: 0.10.0
libtpu: 0.0.40
codegen_flags: <defaults>
</compile_context>

<pallas_src>
from functools import partial
import warnings

import numpy as np
import jax
import jax.numpy as jnp
from jax.experimental import pallas as pl
from jax.experimental.pallas import tpu as pltpu

_LOG2PI = float(np.log(2.0 * np.pi))
_LM = 10.0


def _glow_kernel(x_ref, mean_ref, hniv_ref, z_ref, obj_ref):
    """One (tb, td) tile of the fused InverseSigmoid + Gaussian-prior forward.

    obj_ref is a lane-dense (tb, 128) accumulator resident across the D
    (reduction) grid axis; the final 128->1 cross-lane reduce happens in the
    wrapper, so the kernel issues no per-step XLU reductions or narrow stores.
    """
    @pl.when(pl.program_id(1) == 0)
    def _init():
        obj_ref[...] = jnp.zeros_like(obj_ref)

    x = x_ref[...]                       # (tb, td) f32, values in (0, 1)
    # 2 EUP logs / element.  (On v7x, if bundle dumps show the single EUP
    # saturating, the jac term -(lx+l1x) could use a cheap VPU polynomial log;
    # on v5e/v6e HBM is the binding resource so exact logs are fine.)
    # NOTE: jnp.log1p(-x) would be more accurate as x->1, but jnp.log(1-x)
    # matches the PyTorch reference rounding.
    lx = jnp.log(x)
    l1x = jnp.log(1.0 - x)

    z = lx - l1x                         # logit(x)
    z_ref[...] = z

    diff = z - mean_ref[...]             # (1, td) broadcasts over the batch tile
    # log|jac| + z-dependent part of the gaussian log-prob.
    # hniv == -0.5 * exp(-2*logsd)  (sign and 0.5 folded in the wrapper).
    contrib = diff * diff * hniv_ref[...] - (lx + l1x)

    # Lane-group accumulation: aligned static 128-lane column slices are
    # vreg-level views; the adds are plain VPU ops (which have slack here).
    ngroups = contrib.shape[1] // 128
    part = contrib[:, 0:128]
    for g in range(1, ngroups):
        part = part + contrib[:, g * 128:(g + 1) * 128]
    obj_ref[...] += part


def _round_up(n, m):
    return ((n + m - 1) // m) * m


def _pick_tile(n, unit, cap):
    """Largest divisor of n that is a multiple of `unit` and <= cap.

    Callers guarantee n % unit == 0, so `unit` itself is always a valid
    fallback (never degrades to a huge full-extent tile)."""
    cap = max(unit, min(cap, n))
    best = unit
    t = unit
    while t <= cap:
        if n % t == 0:
            best = t
        t += unit
    return best


def _vmem_capacity_bytes():
    try:
        info = pltpu.get_tpu_info()
        cap = getattr(info, "vmem_capacity_bytes", None)
        if cap:
            return int(cap)
    except Exception:
        pass
    return 64 << 20   # conservative default: v7x per-TensorCore VMEM


@partial(jax.jit, static_argnames=("max_tb", "max_td"), donate_argnums=(0,))
def glow_forward(x_nchw, objective, weight, bias, *, max_tb=256, max_td=4096):
    """x_nchw: (B, C, H, W) in (0,1); objective: (B,);
    weight: (2*D, 1), bias: (2*D,)  (nn.Linear(1, 2*D) parameters).

    x_nchw is donated (its HBM buffer is reused for z via
    input_output_aliases); callers must not reuse the array afterwards."""
    B, C, H, W = x_nchw.shape
    D = C * H * W
    x = x_nchw.reshape(B, D).astype(jnp.float32)

    # --- hoisted parameter transforms: O(D), done once, not per batch tile ----
    lin_out = (weight[:, 0] + bias).astype(jnp.float32)      # Linear(1,2D)(ones)
    mean = jnp.tanh(lin_out[:D] / 100.0) * 100.0
    logsd = jnp.log(jnp.log1p(jnp.exp(jnp.tanh(lin_out[D:] / _LM) * _LM - _LM / 2.0)))
    half_neg_inv_var = -0.5 * jnp.exp(-2.0 * logsd)
    # Batch-independent part of the gaussian log-prob: a single scalar.
    const = jnp.sum(-0.5 * (_LOG2PI + 2.0 * logsd))

    # --- padding to (8, 128)-friendly extents (robust to awkward shapes) ------
    Bp = B if B <= 8 else _round_up(B, 8)
    Dp = _round_up(D, 128)
    pad_cols = Dp - D
    if Bp > B or pad_cols:
        x = jnp.pad(x, ((0, Bp - B), (0, pad_cols)), constant_values=0.5)
    if pad_cols:
        mean = jnp.pad(mean, (0, pad_cols))
        half_neg_inv_var = jnp.pad(half_neg_inv_var, (0, pad_cols))
    mean = mean.reshape(1, Dp)
    half_neg_inv_var = half_neg_inv_var.reshape(1, Dp)
    # Each padded column (x=0.5, mean=0, hniv=0) contributes exactly 2*ln2.
    pad_corr = float(pad_cols) * 2.0 * float(np.log(2.0))

    # --- tiling ----------------------------------------------------------------
    if Bp % 8 == 0:
        # Ensure >= 2 batch tiles when possible so v7x's 2 TensorCores both run.
        tb_cap = min(max_tb, Bp // 2 if Bp >= 16 else Bp)
        tb = _pick_tile(Bp, 8, tb_cap)
    else:
        tb = Bp                      # tiny batch (<8): full-extent block is legal
    td = _pick_tile(Dp, 128, min(max_td, Dp))
    grid = (Bp // tb, Dp // td)

    # --- VMEM budgeting (double-buffered x/z tiles dominate) -------------------
    vmem_req = 4 * (2 * tb * td          # x, double-buffered
                    + 2 * tb * td        # z, double-buffered
                    + 2 * 2 * td         # mean + hniv blocks
                    + 2 * tb * 128)      # obj accumulator block
    cap = _vmem_capacity_bytes()
    vmem_limit = min(max(vmem_req + (8 << 20), 32 << 20), cap - (8 << 20))
    vmem_limit = max(vmem_limit, vmem_req + (2 << 20))

    z_p, obj_p = pl.pallas_call(
        _glow_kernel,
        out_shape=(
            jax.ShapeDtypeStruct((Bp, Dp), jnp.float32),     # z (aliases x)
            jax.ShapeDtypeStruct((Bp, 128), jnp.float32),    # lane-partial objective
        ),
        grid=grid,
        in_specs=[
            pl.BlockSpec((tb, td), lambda b, d: (b, d)),     # x
            pl.BlockSpec((1, td), lambda b, d: (0, d)),      # mean
            pl.BlockSpec((1, td), lambda b, d: (0, d)),      # -0.5 / var
        ],
        out_specs=(
            pl.BlockSpec((tb, td), lambda b, d: (b, d)),     # z (lane-dense)
            pl.BlockSpec((tb, 128), lambda b, d: (b, 0)),    # obj acc, resident over d
        ),
        input_output_aliases={0: 0},   # x fully consumed -> reuse its HBM buffer for z
        compiler_params=pltpu.CompilerParams(
            dimension_semantics=("parallel", "arbitrary"),
            vmem_limit_bytes=int(vmem_limit),
        ),
    )(x, mean, half_neg_inv_var)

    obj = objective.astype(jnp.float32) + obj_p[:B].sum(axis=-1) + const - pad_corr
    z = z_p[:B, :D].reshape(B, C, H, W)
    return z, obj


def _reference_forward(x_nchw, objective, weight, bias):
    """Pure-JAX reference mirroring the PyTorch module, for verification."""
    B, C, H, W = x_nchw.shape
    D = C * H * W
    x = x_nchw.astype(jnp.float32)

    jac = 1.0 / x + 1.0 / (1.0 - x)
    objective = objective + jnp.log(jac).reshape(B, -1).sum(-1)
    z = -jnp.log(1.0 / x - 1.0)

    lin_out = weight[:, 0] + bias                                   # (2*D,)
    mean_and_logsd = jnp.broadcast_to(lin_out, (B, 2 * D)).reshape(B, 2 * C, H, W)
    mean, logsd = mean_and_logsd[:, :C], mean_and_logsd[:, C:]
    mean = jnp.tanh(mean / 100.0) * 100.0
    logsd = jnp.log(jnp.log(1.0 + jnp.exp(jnp.tanh(logsd / _LM) * _LM - _LM / 2.0)))
    var = jnp.exp(2.0 * logsd)
    ll = -0.5 * (_LOG2PI + 2.0 * logsd + (z - mean) ** 2 / var)
    objective = objective + ll.reshape(B, -1).sum(-1)
    return z, objective


if __name__ == "__main__":
    # Donation of unusable buffers only produces a warning; keep output clean.
    warnings.filterwarnings("ignore", message="Some donated buffers were not usable")

    B, C, H, W = 2, 4, 16, 16
    D = C * H * W

    key = jax.random.PRNGKey(0)
    kx, kw, kb = jax.random.split(key, 3)

    # Input must lie strictly in (0, 1) for the inverse sigmoid.
    x = jax.nn.sigmoid(jax.random.normal(kx, (B, C, H, W), dtype=jnp.float32))
    objective = jnp.zeros((B,), dtype=jnp.float32)

    # Deterministic nn.Linear(1, 2*D) parameters (synthetic init).
    weight = 0.1 * jax.random.normal(kw, (2 * D, 1), dtype=jnp.float32)
    bias = 0.1 * jax.random.normal(kb, (2 * D,), dtype=jnp.float32)

    z_expect, obj_expect = _reference_forward(x, objective, weight, bias)

    # Run once with default tiles and once with small D tiles to exercise the
    # multi-step reduction grid / accumulator path.  x is donated, so pass a
    # fresh copy each call.
    for kwargs in ({}, {"max_td": 256}):
        z, obj = glow_forward(jnp.array(x, copy=True), objective, weight, bias, **kwargs)
        z = jax.block_until_ready(z)
        obj = jax.block_until_ready(obj)
        assert z.shape == (B, C, H, W) and obj.shape == (B,)
        np.testing.assert_allclose(np.asarray(z), np.asarray(z_expect), rtol=1e-4, atol=1e-4)
        np.testing.assert_allclose(np.asarray(obj), np.asarray(obj_expect), rtol=2e-3, atol=1e-2)

    print("KERNEL_OK")
</pallas_src>

<mosaic_0001>
module attributes {stable_mosaic.version = 11 : i64} {
  func.func @_glow_kernel(%arg0: i32, %arg1: i32, %arg2: memref<2x1024xf32, #tpu.memory_space<vmem>>, %arg3: memref<1x1024xf32, #tpu.memory_space<vmem>>, %arg4: memref<1x1024xf32, #tpu.memory_space<vmem>>, %arg5: memref<2x1024xf32, #tpu.memory_space<vmem>>, %arg6: memref<2x128xf32, #tpu.memory_space<vmem>>) attributes {dimension_semantics = [#tpu.dimension_semantics<parallel>, #tpu.dimension_semantics<arbitrary>], iteration_bounds = array<i64: 1, 1>, scalar_prefetch = 0 : i64, scratch_operands = 0 : i64, tpu.core_type = #tpu.core_type<tc>, window_params = [{transform_indices = @transform_0, window_bounds = array<i64: 2, 1024>}, {transform_indices = @transform_1, window_bounds = array<i64: 1, 1024>}, {transform_indices = @transform_2, window_bounds = array<i64: 1, 1024>}, {transform_indices = @transform_3, window_bounds = array<i64: 2, 1024>}, {transform_indices = @transform_4, window_bounds = array<i64: 2, 128>}]} {
    %c0_i32 = arith.constant 0 : i32
    %0 = arith.cmpi eq, %arg1, %c0_i32 : i32
    %1 = arith.extui %0 : i1 to i32
    %c0_i32_0 = arith.constant 0 : i32
    %2 = arith.cmpi ne, %1, %c0_i32_0 : i32
    scf.if %2 {
      %cst_12 = arith.constant 0.000000e+00 : f32
      %37 = vector.broadcast %cst_12 : f32 to vector<2x128xf32>
      %c0_13 = arith.constant 0 : index
      %c0_14 = arith.constant 0 : index
      %38 = vector.load %arg6[%c0_13, %c0_14] : memref<2x128xf32, #tpu.memory_space<vmem>>, vector<2x128xf32>
      tpu.vector_store %arg6[%c0_13, %c0_14], %37 {strides = array<i32>} : memref<2x128xf32, #tpu.memory_space<vmem>>, vector<2x128xf32>,
    } else {
    }
    %c0 = arith.constant 0 : index
    %c0_1 = arith.constant 0 : index
    %3 = vector.load %arg2[%c0, %c0_1] : memref<2x1024xf32, #tpu.memory_space<vmem>>, vector<2x1024xf32>
    %4 = math.log %3 : vector<2x1024xf32>
    %cst = arith.constant 1.000000e+00 : f32
    %5 = vector.broadcast %cst : f32 to vector<2x1024xf32>
    %6 = arith.subf %5, %3 : vector<2x1024xf32>
    %7 = math.log %6 : vector<2x1024xf32>
    %8 = arith.subf %4, %7 : vector<2x1024xf32>
    %c0_2 = arith.constant 0 : index
    %c0_3 = arith.constant 0 : index
    %9 = vector.load %arg5[%c0_2, %c0_3] : memref<2x1024xf32, #tpu.memory_space<vmem>>, vector<2x1024xf32>
    tpu.vector_store %arg5[%c0_2, %c0_3], %8 {strides = array<i32>} : memref<2x1024xf32, #tpu.memory_space<vmem>>, vector<2x1024xf32>,
    %c0_4 = arith.constant 0 : index
    %c0_5 = arith.constant 0 : index
    %10 = vector.load %arg3[%c0_4, %c0_5] : memref<1x1024xf32, #tpu.memory_space<vmem>>, vector<1x1024xf32>
    %11 = vector.broadcast %10 : vector<1x1024xf32> to vector<2x1024xf32>
    %12 = arith.subf %8, %11 : vector<2x1024xf32>
    %13 = arith.mulf %12, %12 : vector<2x1024xf32>
    %c0_6 = arith.constant 0 : index
    %c0_7 = arith.constant 0 : index
    %14 = vector.load %arg4[%c0_6, %c0_7] : memref<1x1024xf32, #tpu.memory_space<vmem>>, vector<1x1024xf32>
    %15 = vector.broadcast %14 : vector<1x1024xf32> to vector<2x1024xf32>
    %16 = arith.mulf %13, %15 : vector<2x1024xf32>
    %17 = arith.addf %4, %7 : vector<2x1024xf32>
    %18 = arith.subf %16, %17 : vector<2x1024xf32>
    %19 = vector.extract_strided_slice %18 {offsets = [0, 0], sizes = [2, 128], strides = [1, 1]} : vector<2x1024xf32> to vector<2x128xf32>
    %20 = vector.extract_strided_slice %18 {offsets = [0, 128], sizes = [2, 128], strides = [1, 1]} : vector<2x1024xf32> to vector<2x128xf32>
    %21 = arith.addf %19, %20 : vector<2x128xf32>
    %22 = vector.extract_strided_slice %18 {offsets = [0, 256], sizes = [2, 128], strides = [1, 1]} : vector<2x1024xf32> to vector<2x128xf32>
    %23 = arith.addf %21, %22 : vector<2x128xf32>
    %24 = vector.extract_strided_slice %18 {offsets = [0, 384], sizes = [2, 128], strides = [1, 1]} : vector<2x1024xf32> to vector<2x128xf32>
    %25 = arith.addf %23, %24 : vector<2x128xf32>
    %26 = vector.extract_strided_slice %18 {offsets = [0, 512], sizes = [2, 128], strides = [1, 1]} : vector<2x1024xf32> to vector<2x128xf32>
    %27 = arith.addf %25, %26 : vector<2x128xf32>
    %28 = vector.extract_strided_slice %18 {offsets = [0, 640], sizes = [2, 128], strides = [1, 1]} : vector<2x1024xf32> to vector<2x128xf32>
    %29 = arith.addf %27, %28 : vector<2x128xf32>
    %30 = vector.extract_strided_slice %18 {offsets = [0, 768], sizes = [2, 128], strides = [1, 1]} : vector<2x1024xf32> to vector<2x128xf32>
    %31 = arith.addf %29, %30 : vector<2x128xf32>
    %32 = vector.extract_strided_slice %18 {offsets = [0, 896], sizes = [2, 128], strides = [1, 1]} : vector<2x1024xf32> to vector<2x128xf32>
    %33 = arith.addf %31, %32 : vector<2x128xf32>
    %c0_8 = arith.constant 0 : index
    %c0_9 = arith.constant 0 : index
    %34 = vector.load %arg6[%c0_8, %c0_9] : memref<2x128xf32, #tpu.memory_space<vmem>>, vector<2x128xf32>
    %35 = arith.addf %34, %33 : vector<2x128xf32>
    %c0_10 = arith.constant 0 : index
    %c0_11 = arith.constant 0 : index
    %36 = vector.load %arg6[%c0_10, %c0_11] : memref<2x128xf32, #tpu.memory_space<vmem>>, vector<2x128xf32>
    tpu.vector_store %arg6[%c0_10, %c0_11], %35 {strides = array<i32>} : memref<2x128xf32, #tpu.memory_space<vmem>>, vector<2x128xf32>,
    return
  }
  func.func @transform_0(%arg0: i32, %arg1: i32) -> (i32, i32) {
    %c0_i32 = arith.constant 0 : i32
    return %arg0, %arg1 : i32, i32
  }
  func.func @transform_1(%arg0: i32, %arg1: i32) -> (i32, i32) {
    %c0_i32 = arith.constant 0 : i32
    %c0_i32_0 = arith.constant 0 : i32
    return %c0_i32, %arg1 : i32, i32
  }
  func.func @transform_2(%arg0: i32, %arg1: i32) -> (i32, i32) {
    %c0_i32 = arith.constant 0 : i32
    %c0_i32_0 = arith.constant 0 : i32
    return %c0_i32, %arg1 : i32, i32
  }
  func.func @transform_3(%arg0: i32, %arg1: i32) -> (i32, i32) {
    %c0_i32 = arith.constant 0 : i32
    return %arg0, %arg1 : i32, i32
  }
  func.func @transform_4(%arg0: i32, %arg1: i32) -> (i32, i32) {
    %c0_i32 = arith.constant 0 : i32
    %c0_i32_0 = arith.constant 0 : i32
    return %arg0, %c0_i32 : i32, i32
  }
}

</mosaic_0001>

<llo_original>
// kernel: glow_forward.1
$region0: #{glow_forward.1}
  #allocation0 [shape = 'u32[]', space=smem, size = 0x4, offset = 0x4, fixed_abs, tag = 'smem constant byte address 0x4 - core index']
  #allocation1 [shape = 'u32[72,128]{1,0:T(1,128)}', space=vmem, size = 0x9000, scoped, tag = 'internal scratch']
  %s0 = inlined_call_operand.vmem [shape: f32[2,1024], index: 0, kind: input, shape index: {}, may-alias: {0,3}]
  %s1 = inlined_call_operand.vmem [shape: f32[1,1024], index: 1, kind: input, shape index: {}]
  %s2 = inlined_call_operand.vmem [shape: f32[1,1024], index: 2, kind: input, shape index: {}]
  %s3 = inlined_call_operand.vmem [shape: f32[2,1024], index: 3, kind: output, shape index: {0}, may-alias: {0,3}]
  %s4 = inlined_call_operand.vmem [shape: f32[2,128], index: 4, kind: output, shape index: {1}]
  %5 = xla_tuple %s3, %s4
  %s6 = sld [smem:[#allocation0]]
  $region34: #{glow_forward.1} parent=0
    _
  %s8 = ssub.s32 1, %s6
  %s9 = scalar_select 0, %s8, %s6
  // Predicated region
  $region2: #{glow_forward.1} parent=0 // pred_check
    _
  $region3: #{glow_forward.1} parent=0 // pred_check_branch
    %11 = sbr.rel (0) target = $region5
  $region4: #{glow_forward.1} parent=0 // pred_region
    _
  $region5: #{glow_forward.1} parent=0 // pred_fallthru
    _
  // Predicated region
  $region6: #{glow_forward.1} parent=0 // pred_check
    _
  $region7: #{glow_forward.1} parent=0 // pred_check_branch
    %13 = sbr.rel (0) target = $region9
  $region8: #{glow_forward.1} parent=0 // pred_region
    _
  $region9: #{glow_forward.1} parent=0 // pred_fallthru
    _
  // Predicated region
  $region10: #{glow_forward.1} parent=0 // pred_check
    _
  $region11: #{glow_forward.1} parent=0 // pred_check_branch
    %15 = sbr.rel (0) target = $region13
  $region12: #{glow_forward.1} parent=0 // pred_region
    _
  $region13: #{glow_forward.1} parent=0 // pred_fallthru
    _
  %p16 = scmp.eq.s32.totalorder 0, 0
  // Predicated region
  $region14: #{glow_forward.1} parent=0 // pred_check
    %p17 = pneg %p16
  $region15: #{glow_forward.1} parent=0 // pred_check_branch
    %19 = sbr.rel (%p17) target = $region17
  $region16: #{glow_forward.1} parent=0 // pred_region
    %20 = vst [vmem:[%s4] sm:$0x3] 0.0
  $region17: #{glow_forward.1} parent=0 // pred_fallthru
    _
  %v21 = vld [vmem:[%s0] sm:$0xff]
  %v22 = vld [vmem:[%s0 + $0x8] sm:$0xff]
  %v23 = vlog2.pop %v21
  %v24 = vmul.f32 %v23, 0.6931472
  %v25 = vlog2.pop %v22
  %v26 = vmul.f32 %v25, 0.6931472
  %v27 = vsub.f32 1.0, %v21
  %v28 = vsub.f32 1.0, %v22
  %v29 = vlog2.pop %v27
  %v30 = vmul.f32 %v29, 0.6931472
  %v31 = vlog2.pop %v28
  %v32 = vmul.f32 %v31, 0.6931472
  %v33 = vsub.f32 %v24, %v30
  %v34 = vsub.f32 %v26, %v32
  %35 = vst [vmem:[%s3] sm:$0xff] %v33
  %36 = vst [vmem:[%s3 + $0x8] sm:$0xff] %v34
  %v37 = vld [vmem:[%s1] sm:$0xff]
  %v39 = vperm.slane %v37, 0
  %v40 = vperm.slane %v37, 1
  %v41 = vperm.slane %v37, 2
  %v42 = vperm.slane %v37, 3
  %v43 = vperm.slane %v37, 4
  %v44 = vperm.slane %v37, 5
  %v45 = vperm.slane %v37, 6
  %v46 = vperm.slane %v37, 7
  %v47 = vrot.slane %v40, 6
  %v48 = vrot.slane %v41, 4
  %v49 = vrot.slane %v42, 2
  %v50 = vrot.slane %v44, 6
  %v51 = vrot.slane %v45, 4
  %v52 = vrot.slane %v46, 2
  %vm53 = vcmask 1041408
  %v54 = vsel %vm53, %v39, %v47
  %vm55 = vcmask 1045508
  %v56 = vsel %vm55, %v48, %v49
  %vm57 = vcmask 1043456
  %v58 = vsel %vm57, %v54, %v56
  %v59 = vsel %vm53, %v43, %v50
  %v60 = vsel %vm55, %v51, %v52
  %v61 = vsel %vm57, %v59, %v60
  %v64 = vsub.f32 %v33, %v58
  %v65 = vsub.f32 %v34, %v61
  %v66 = vmul.f32 %v64, %v64
  %v67 = vmul.f32 %v65, %v65
  %v68 = vld [vmem:[%s2] sm:$0xff]
  %v70 = vperm.slane %v68, 0
  %v71 = vperm.slane %v68, 1
  %v72 = vperm.slane %v68, 2
  %v73 = vperm.slane %v68, 3
  %v74 = vperm.slane %v68, 4
  %v75 = vperm.slane %v68, 5
  %v76 = vperm.slane %v68, 6
  %v77 = vperm.slane %v68, 7
  %v78 = vrot.slane %v71, 6
  %v79 = vrot.slane %v72, 4
  %v80 = vrot.slane %v73, 2
  %v81 = vrot.slane %v75, 6
  %v82 = vrot.slane %v76, 4
  %v83 = vrot.slane %v77, 2
  %v84 = vsel %vm53, %v70, %v78
  %v85 = vsel %vm55, %v79, %v80
  %v86 = vsel %vm57, %v84, %v85
  %v87 = vsel %vm53, %v74, %v81
  %v88 = vsel %vm55, %v82, %v83
  %v89 = vsel %vm57, %v87, %v88
  %v92 = vmul.f32 %v66, %v86
  %v93 = vmul.f32 %v67, %v89
  %v94 = vadd.f32 %v24, %v30
  %v95 = vadd.f32 %v26, %v32
  %v96 = vsub.f32 %v92, %v94
  %v97 = vsub.f32 %v93, %v95
  %v99 = vrot.slane %v96, 2
  %v101 = vadd.f32 %v96, %v99
  %v102 = vrot.slane %v96, 4
  %v104 = vadd.f32 %v101, %v102
  %v105 = vrot.slane %v96, 6
  %v107 = vadd.f32 %v104, %v105
  %v108 = vadd.f32 %v107, %v97
  %v110 = vrot.slane %v97, 2
  %v112 = vadd.f32 %v108, %v110
  %v113 = vrot.slane %v97, 4
  %v115 = vadd.f32 %v112, %v113
  %v116 = vrot.slane %v97, 6
  %v118 = vadd.f32 %v115, %v116
  %v119 = vld [vmem:[%s4] sm:$0x3]
  %v120 = vadd.f32 %v119, %v118
  %121 = vst [vmem:[%s4] sm:$0x3] %v120
  // Predicated region
  $region18: #{glow_forward.1} parent=0 // pred_check
    _
  $region19: #{glow_forward.1} parent=0 // pred_check_branch
    %123 = sbr.rel (0) target = $region21
  $region20: #{glow_forward.1} parent=0 // pred_region
    _
  $region21: #{glow_forward.1} parent=0 // pred_fallthru
    _
  // Predicated region
  $region22: #{glow_forward.1} parent=0 // pred_check
    _
  $region23: #{glow_forward.1} parent=0 // pred_check_branch
    %125 = sbr.rel (0) target = $region25
  $region24: #{glow_forward.1} parent=0 // pred_region
    _
  $region25: #{glow_forward.1} parent=0 // pred_fallthru
    _
  // Predicated region
  $region26: #{glow_forward.1} parent=0 // pred_check
    _
  $region27: #{glow_forward.1} parent=0 // pred_check_branch
    %127 = sbr.rel (0) target = $region29
  $region28: #{glow_forward.1} parent=0 // pred_region
    _
  $region29: #{glow_forward.1} parent=0 // pred_fallthru
    _
  // Predicated region
  $region30: #{glow_forward.1} parent=0 // pred_check
    _
  $region31: #{glow_forward.1} parent=0 // pred_check_branch
    %129 = sbr.rel (0) target = $region33
  $region32: #{glow_forward.1} parent=0 // pred_region
    _
  $region33: #{glow_forward.1} parent=0 // pred_fallthru
    _

</llo_original>
